<compile_context>
chip_gen: v7x
topology: tpu7x:2x2x1
jax: 0.10.0
libtpu: 0.0.40
codegen_flags: <defaults>
</compile_context>

<pallas_src>
import jax
import jax.numpy as jnp
from jax.experimental import pallas as pl
from jax.experimental.pallas import tpu as pltpu


def _resblock1x1_kernel(x_ref, w1_ref, b1_ref, w2_ref, b2_ref, o_ref):
    # x_ref/o_ref block: (nb, C, t_hw); w*: (C, C) BN-folded; b*: (C, 1) f32.
    nb = x_ref.shape[0]
    w1 = w1_ref[...]
    w2 = w2_ref[...]
    b1 = b1_ref[...]
    b2 = b2_ref[...]
    for n in range(nb):                               # static, small trip count
        x = x_ref[n]                                  # (C, t_hw)

        # conv1 (BN scale folded into w1) -> +bias -> relu
        h = jnp.dot(w1, x.astype(w1.dtype), preferred_element_type=jnp.float32)
        h = jnp.maximum(h + b1, 0.0)

        # conv2 (BN scale folded into w2) -> +bias
        y = jnp.dot(w2, h.astype(w2.dtype), preferred_element_type=jnp.float32)
        y = y + b2

        # residual add + relu
        o_ref[n] = jnp.maximum(x.astype(jnp.float32) + y, 0.0).astype(o_ref.dtype)


def _pick_tiles(n, c, hw_pad, x_itemsize, mxu_itemsize, budget_bytes):
    """Choose (nb, t_hw) so the whole per-step working set fits `budget_bytes`,
    while blocks are >= ~1 MiB to amortize per-grid-step overhead."""
    # Per x-block element of the per-step working set:
    #   x block (2 bufs) + out block (2 bufs) + f32 h,y intermediates + mxu casts
    per_elem = 4 * x_itemsize + 8 + 2 * mxu_itemsize
    # Grid-invariant operands (weights + padded biases), double-buffered.
    fixed = 2 * 2 * c * c * mxu_itemsize + 2 * 2 * c * 128 * 4
    avail = max(budget_bytes - fixed, 1 << 20)

    # Spatial tile: largest multiple of 128 that divides hw_pad and fits.
    m = hw_pad // 128
    d = 1
    for cand in range(m, 0, -1):
        if m % cand == 0 and c * 128 * cand * per_elem <= avail:
            d = cand
            break
    t_hw = 128 * d

    # Batch blocking: grow until the x block reaches ~1 MiB, within budget.
    target = 1 << 20
    nb = 1
    for cand in range(1, n + 1):
        if n % cand != 0:
            continue
        if cand * c * t_hw * per_elem > avail:
            break
        nb = cand
        if cand * c * t_hw * x_itemsize >= target:
            break

    # v7x has 2 TensorCores: if everything collapsed into one grid step but the
    # block is large enough to split, halve one axis so both cores get work.
    if (n // nb) * (hw_pad // t_hw) == 1 and nb * c * t_hw * x_itemsize >= (2 << 20):
        if t_hw % 256 == 0:
            t_hw //= 2
        elif nb % 2 == 0:
            nb //= 2
    return nb, t_hw


def resblock1x1_forward(x, w1, gamma1, beta1, mean1, var1,
                        w2, gamma2, beta2, mean2, var2, eps=1e-5,
                        mxu_dtype=jnp.bfloat16, budget_bytes=20 << 20):
    """ResBlock1x1 forward (eval-mode BN).  x: (N, C, H, W) NCHW.
    w1, w2: (C, C) 1x1-conv weights (bias=False).  mxu_dtype selects the MXU
    input precision (bf16 default, f32 accumulation either way)."""
    N, C, H, W = x.shape
    assert w1.shape == (C, C) and w2.shape == (C, C), \
        "residual add requires in_channel == out_channel, stride == 1"
    dtype = x.dtype
    mxu_dtype = jnp.dtype(mxu_dtype)

    # Fold BN (running stats) into the conv weights (scale) and a bias vector.
    s1 = gamma1.astype(jnp.float32) / jnp.sqrt(var1.astype(jnp.float32) + eps)
    s2 = gamma2.astype(jnp.float32) / jnp.sqrt(var2.astype(jnp.float32) + eps)
    w1f = (w1.astype(jnp.float32) * s1[:, None]).astype(mxu_dtype)
    w2f = (w2.astype(jnp.float32) * s2[:, None]).astype(mxu_dtype)
    b1 = (beta1.astype(jnp.float32) - mean1.astype(jnp.float32) * s1).reshape(C, 1)
    b2 = (beta2.astype(jnp.float32) - mean2.astype(jnp.float32) * s2).reshape(C, 1)

    # Lane-dense spatial axis: pad HW up to a multiple of 128, slice after.
    HW = H * W
    hw_pad = -(-HW // 128) * 128
    x3 = x.reshape(N, C, HW)
    if hw_pad != HW:
        x3 = jnp.pad(x3, ((0, 0), (0, 0), (0, hw_pad - HW)))

    nb, t_hw = _pick_tiles(N, C, hw_pad, dtype.itemsize, mxu_dtype.itemsize,
                           budget_bytes)
    grid = (N // nb, hw_pad // t_hw)
    vmem_limit = int(min(2 * budget_bytes + (8 << 20), 112 << 20))

    out = pl.pallas_call(
        _resblock1x1_kernel,
        out_shape=jax.ShapeDtypeStruct((N, C, hw_pad), dtype),
        grid_spec=pltpu.PrefetchScalarGridSpec(
            num_scalar_prefetch=0,
            grid=grid,
            in_specs=[
                pl.BlockSpec((nb, C, t_hw), lambda n, j: (n, 0, j)),  # x tile
                pl.BlockSpec((C, C), lambda n, j: (0, 0)),            # w1 (BN-folded)
                pl.BlockSpec((C, 1), lambda n, j: (0, 0)),            # bn1 bias
                pl.BlockSpec((C, C), lambda n, j: (0, 0)),            # w2 (BN-folded)
                pl.BlockSpec((C, 1), lambda n, j: (0, 0)),            # bn2 bias
            ],
            out_specs=pl.BlockSpec((nb, C, t_hw), lambda n, j: (n, 0, j)),
        ),
        compiler_params=pltpu.CompilerParams(
            dimension_semantics=("parallel", "parallel"),
            vmem_limit_bytes=vmem_limit,
        ),
    )(x3, w1f, b1, w2f, b2)

    if hw_pad != HW:
        out = out[:, :, :HW]
    return out.reshape(N, C, H, W)


def _ref_forward(x, w1, gamma1, beta1, mean1, var1,
                 w2, gamma2, beta2, mean2, var2, eps=1e-5):
    """Pure-JAX reference matching PyTorch ResBlock1x1 in eval mode."""
    def conv1x1(a, w):
        return jnp.einsum('oc,nchw->nohw', w, a)

    def bn(a, g, b, m, v):
        g = g[None, :, None, None]
        b = b[None, :, None, None]
        m = m[None, :, None, None]
        v = v[None, :, None, None]
        return (a - m) / jnp.sqrt(v + eps) * g + b

    out = jax.nn.relu(bn(conv1x1(x, w1), gamma1, beta1, mean1, var1))
    out = jax.nn.relu(x + bn(conv1x1(out, w2), gamma2, beta2, mean2, var2))
    return out


if __name__ == "__main__":
    key = jax.random.PRNGKey(0)
    N, C, H, W = 2, 8, 16, 16
    ks = jax.random.split(key, 12)

    x = jax.random.normal(ks[0], (N, C, H, W), dtype=jnp.float32)
    w1 = 0.3 * jax.random.normal(ks[1], (C, C), dtype=jnp.float32)
    w2 = 0.3 * jax.random.normal(ks[2], (C, C), dtype=jnp.float32)
    gamma1 = jax.random.uniform(ks[3], (C,), minval=0.5, maxval=1.5, dtype=jnp.float32)
    beta1 = 0.1 * jax.random.normal(ks[4], (C,), dtype=jnp.float32)
    mean1 = 0.1 * jax.random.normal(ks[5], (C,), dtype=jnp.float32)
    var1 = jax.random.uniform(ks[6], (C,), minval=0.5, maxval=1.5, dtype=jnp.float32)
    gamma2 = jax.random.uniform(ks[7], (C,), minval=0.5, maxval=1.5, dtype=jnp.float32)
    beta2 = 0.1 * jax.random.normal(ks[8], (C,), dtype=jnp.float32)
    mean2 = 0.1 * jax.random.normal(ks[9], (C,), dtype=jnp.float32)
    var2 = jax.random.uniform(ks[10], (C,), minval=0.5, maxval=1.5, dtype=jnp.float32)

    args = (x, w1, gamma1, beta1, mean1, var1, w2, gamma2, beta2, mean2, var2)
    ref = _ref_forward(*args)

    # Full-f32 MXU path: strict check against the f32 reference.
    y_f32 = jax.block_until_ready(resblock1x1_forward(*args, mxu_dtype=jnp.float32))
    assert y_f32.shape == (N, C, H, W)
    assert bool(jnp.allclose(y_f32, ref, rtol=1e-4, atol=1e-3)), \
        f"f32 path: max abs err = {float(jnp.max(jnp.abs(y_f32 - ref)))}"

    # Default bf16-MXU path (f32 accumulation): loose sanity check.
    y_bf16 = jax.block_until_ready(resblock1x1_forward(*args))
    assert y_bf16.shape == (N, C, H, W)
    assert bool(jnp.allclose(y_bf16, ref, rtol=1e-1, atol=3e-1)), \
        f"bf16 path: max abs err = {float(jnp.max(jnp.abs(y_bf16 - ref)))}"

    print("KERNEL_OK")
</pallas_src>

<mosaic_0001>
module attributes {stable_mosaic.version = 11 : i64} {
  func.func @_resblock1x1_kernel(%arg0: i32, %arg1: i32, %arg2: memref<2x8x256xf32, #tpu.memory_space<vmem>>, %arg3: memref<8x8xf32, #tpu.memory_space<vmem>>, %arg4: memref<8x1xf32, #tpu.memory_space<vmem>>, %arg5: memref<8x8xf32, #tpu.memory_space<vmem>>, %arg6: memref<8x1xf32, #tpu.memory_space<vmem>>, %arg7: memref<2x8x256xf32, #tpu.memory_space<vmem>>) attributes {dimension_semantics = [#tpu.dimension_semantics<parallel>, #tpu.dimension_semantics<parallel>], iteration_bounds = array<i64: 1, 1>, scalar_prefetch = 0 : i64, scratch_operands = 0 : i64, tpu.core_type = #tpu.core_type<tc>, window_params = [{transform_indices = @transform_0, window_bounds = array<i64: 2, 8, 256>}, {pipeline_mode = #tpu.pipeline_mode<synchronous>, transform_indices = @transform_1, window_bounds = array<i64: 8, 8>}, {pipeline_mode = #tpu.pipeline_mode<synchronous>, transform_indices = @transform_2, window_bounds = array<i64: 8, 1>}, {pipeline_mode = #tpu.pipeline_mode<synchronous>, transform_indices = @transform_3, window_bounds = array<i64: 8, 8>}, {pipeline_mode = #tpu.pipeline_mode<synchronous>, transform_indices = @transform_4, window_bounds = array<i64: 8, 1>}, {transform_indices = @transform_5, window_bounds = array<i64: 2, 8, 256>}]} {
    %c0 = arith.constant 0 : index
    %c0_0 = arith.constant 0 : index
    %0 = vector.load %arg3[%c0, %c0_0] : memref<8x8xf32, #tpu.memory_space<vmem>>, vector<8x8xf32>
    %c0_1 = arith.constant 0 : index
    %c0_2 = arith.constant 0 : index
    %1 = vector.load %arg5[%c0_1, %c0_2] : memref<8x8xf32, #tpu.memory_space<vmem>>, vector<8x8xf32>
    %c0_3 = arith.constant 0 : index
    %c0_4 = arith.constant 0 : index
    %2 = vector.load %arg4[%c0_3, %c0_4] : memref<8x1xf32, #tpu.memory_space<vmem>>, vector<8x1xf32>
    %c0_5 = arith.constant 0 : index
    %c0_6 = arith.constant 0 : index
    %3 = vector.load %arg6[%c0_5, %c0_6] : memref<8x1xf32, #tpu.memory_space<vmem>>, vector<8x1xf32>
    %c0_7 = arith.constant 0 : index
    %c0_8 = arith.constant 0 : index
    %c0_9 = arith.constant 0 : index
    %4 = vector.load %arg2[%c0_7, %c0_8, %c0_9] : memref<2x8x256xf32, #tpu.memory_space<vmem>>, vector<1x8x256xf32>
    %5 = vector.shape_cast %4 : vector<1x8x256xf32> to vector<8x256xf32>
    %cst = arith.constant dense<0.000000e+00> : vector<8x256xf32>
    %6 = tpu.matmul %0, %5, %cst {dimension_numbers = #tpu.dot_dimension_numbers<[1], [0], [0], [1], [0, 0, 1, 1], [], []>} : vector<8x8xf32>, vector<8x256xf32>, vector<8x256xf32> -> vector<8x256xf32>
    %7 = vector.broadcast %2 : vector<8x1xf32> to vector<8x256xf32>
    %8 = arith.addf %6, %7 : vector<8x256xf32>
    %cst_10 = arith.constant 0.000000e+00 : f32
    %9 = vector.broadcast %cst_10 : f32 to vector<8x256xf32>
    %10 = arith.maximumf %8, %9 : vector<8x256xf32>
    %cst_11 = arith.constant dense<0.000000e+00> : vector<8x256xf32>
    %11 = tpu.matmul %1, %10, %cst_11 {dimension_numbers = #tpu.dot_dimension_numbers<[1], [0], [0], [1], [0, 0, 1, 1], [], []>} : vector<8x8xf32>, vector<8x256xf32>, vector<8x256xf32> -> vector<8x256xf32>
    %12 = vector.broadcast %3 : vector<8x1xf32> to vector<8x256xf32>
    %13 = arith.addf %11, %12 : vector<8x256xf32>
    %14 = arith.addf %5, %13 : vector<8x256xf32>
    %cst_12 = arith.constant 0.000000e+00 : f32
    %15 = vector.broadcast %cst_12 : f32 to vector<8x256xf32>
    %16 = arith.maximumf %14, %15 : vector<8x256xf32>
    %c0_13 = arith.constant 0 : index
    %c0_14 = arith.constant 0 : index
    %c0_15 = arith.constant 0 : index
    %17 = vector.load %arg7[%c0_13, %c0_14, %c0_15] : memref<2x8x256xf32, #tpu.memory_space<vmem>>, vector<1x8x256xf32>
    %18 = vector.shape_cast %17 : vector<1x8x256xf32> to vector<8x256xf32>
    %19 = vector.shape_cast %16 : vector<8x256xf32> to vector<1x8x256xf32>
    tpu.vector_store %arg7[%c0_13, %c0_14, %c0_15], %19 {strides = array<i32>} : memref<2x8x256xf32, #tpu.memory_space<vmem>>, vector<1x8x256xf32>,
    %c1 = arith.constant 1 : index
    %c0_16 = arith.constant 0 : index
    %c0_17 = arith.constant 0 : index
    %20 = vector.load %arg2[%c1, %c0_16, %c0_17] : memref<2x8x256xf32, #tpu.memory_space<vmem>>, vector<1x8x256xf32>
    %21 = vector.shape_cast %20 : vector<1x8x256xf32> to vector<8x256xf32>
    %cst_18 = arith.constant dense<0.000000e+00> : vector<8x256xf32>
    %22 = tpu.matmul %0, %21, %cst_18 {dimension_numbers = #tpu.dot_dimension_numbers<[1], [0], [0], [1], [0, 0, 1, 1], [], []>} : vector<8x8xf32>, vector<8x256xf32>, vector<8x256xf32> -> vector<8x256xf32>
    %23 = vector.broadcast %2 : vector<8x1xf32> to vector<8x256xf32>
    %24 = arith.addf %22, %23 : vector<8x256xf32>
    %cst_19 = arith.constant 0.000000e+00 : f32
    %25 = vector.broadcast %cst_19 : f32 to vector<8x256xf32>
    %26 = arith.maximumf %24, %25 : vector<8x256xf32>
    %cst_20 = arith.constant dense<0.000000e+00> : vector<8x256xf32>
    %27 = tpu.matmul %1, %26, %cst_20 {dimension_numbers = #tpu.dot_dimension_numbers<[1], [0], [0], [1], [0, 0, 1, 1], [], []>} : vector<8x8xf32>, vector<8x256xf32>, vector<8x256xf32> -> vector<8x256xf32>
    %28 = vector.broadcast %3 : vector<8x1xf32> to vector<8x256xf32>
    %29 = arith.addf %27, %28 : vector<8x256xf32>
    %30 = arith.addf %21, %29 : vector<8x256xf32>
    %cst_21 = arith.constant 0.000000e+00 : f32
    %31 = vector.broadcast %cst_21 : f32 to vector<8x256xf32>
    %32 = arith.maximumf %30, %31 : vector<8x256xf32>
    %c1_22 = arith.constant 1 : index
    %c0_23 = arith.constant 0 : index
    %c0_24 = arith.constant 0 : index
    %33 = vector.load %arg7[%c1_22, %c0_23, %c0_24] : memref<2x8x256xf32, #tpu.memory_space<vmem>>, vector<1x8x256xf32>
    %34 = vector.shape_cast %33 : vector<1x8x256xf32> to vector<8x256xf32>
    %35 = vector.shape_cast %32 : vector<8x256xf32> to vector<1x8x256xf32>
    tpu.vector_store %arg7[%c1_22, %c0_23, %c0_24], %35 {strides = array<i32>} : memref<2x8x256xf32, #tpu.memory_space<vmem>>, vector<1x8x256xf32>,
    return
  }
  func.func @transform_0(%arg0: i32, %arg1: i32) -> (i32, i32, i32) {
    %c0_i32 = arith.constant 0 : i32
    %c0_i32_0 = arith.constant 0 : i32
    return %arg0, %c0_i32, %arg1 : i32, i32, i32
  }
  func.func @transform_1(%arg0: i32, %arg1: i32) -> (i32, i32) {
    %c0_i32 = arith.constant 0 : i32
    %c0_i32_0 = arith.constant 0 : i32
    %c0_i32_1 = arith.constant 0 : i32
    return %c0_i32, %c0_i32_0 : i32, i32
  }
  func.func @transform_2(%arg0: i32, %arg1: i32) -> (i32, i32) {
    %c0_i32 = arith.constant 0 : i32
    %c0_i32_0 = arith.constant 0 : i32
    %c0_i32_1 = arith.constant 0 : i32
    return %c0_i32, %c0_i32_0 : i32, i32
  }
  func.func @transform_3(%arg0: i32, %arg1: i32) -> (i32, i32) {
    %c0_i32 = arith.constant 0 : i32
    %c0_i32_0 = arith.constant 0 : i32
    %c0_i32_1 = arith.constant 0 : i32
    return %c0_i32, %c0_i32_0 : i32, i32
  }
  func.func @transform_4(%arg0: i32, %arg1: i32) -> (i32, i32) {
    %c0_i32 = arith.constant 0 : i32
    %c0_i32_0 = arith.constant 0 : i32
    %c0_i32_1 = arith.constant 0 : i32
    return %c0_i32, %c0_i32_0 : i32, i32
  }
  func.func @transform_5(%arg0: i32, %arg1: i32) -> (i32, i32, i32) {
    %c0_i32 = arith.constant 0 : i32
    %c0_i32_0 = arith.constant 0 : i32
    return %arg0, %c0_i32, %arg1 : i32, i32, i32
  }
}

</mosaic_0001>

<llo_original>
// kernel: tpu_custom_call.1
$region0: #{tpu_custom_call.1}
  #allocation0 [shape = 'u32[]', space=smem, size = 0x4, offset = 0x4, fixed_abs, tag = 'smem constant byte address 0x4 - core index']
  #allocation1 [shape = 'u32[144,128]{1,0:T(1,128)}', space=vmem, size = 0x12000, scoped, tag = 'internal scratch']
  %s0 = inlined_call_operand.hbm [shape: f32[2,8,256], index: 0, kind: input, shape index: {}]
  %s1 = inlined_call_operand.vmem [shape: f32[8,8], index: 1, kind: input, shape index: {}]
  %s2 = inlined_call_operand.vmem [shape: f32[8,1], index: 2, kind: input, shape index: {}]
  %s3 = inlined_call_operand.vmem [shape: f32[8,8], index: 3, kind: input, shape index: {}]
  %s4 = inlined_call_operand.vmem [shape: f32[8,1], index: 4, kind: input, shape index: {}]
  %s5 = inlined_call_operand.hbm [shape: f32[2,8,256], index: 5, kind: output, shape index: {}]
  %s6 = sld [smem:[#allocation0]]
  $region34: #{tpu_custom_call.1} parent=0
    _
  %s8 = ssub.s32 1, %s6
  %s9 = scalar_select 0, %s8, %s6
  $region1: #{tpu_custom_call.1} parent=0
    #allocation2 [shape = 'u8[16384]{0}', space=vmem, size = 0x4000, scoped, tag = 'input window, operand 0, single buffered']
    #allocation3 [shape = 's32[1]{0}', space=sflag, size = 0x4, scoped, tag = 'scoped memory for tpu_custom_call.1']
    #allocation4 [shape = 's32[1]{0}', space=sflag, size = 0x4, scoped, tag = 'scoped memory for tpu_custom_call.1']
    #allocation5 [shape = 'u8[16384]{0}', space=vmem, size = 0x4000, scoped, tag = 'output window, operand 0, single buffered']
    %10 = vsyncpa [#allocation3], 0
    %11 = vsyncpa [#allocation4], 0
    // Predicated region
    $region2: #{tpu_custom_call.1} parent=1 // pred_check
      _
    $region3: #{tpu_custom_call.1} parent=1 // pred_check_branch
      %13 = sbr.rel (0) target = $region5
    $region4: #{tpu_custom_call.1} parent=1 // pred_region
      %s15 = ssub.s32 512, 512
      %16 = vsyncadd [#allocation3], %s15
      %s17 = sshll.u32 [#allocation2], 4
      %s18 = int_to_ptr.vmem [resolvable:$true] %s17
      %23 = dma.hbm_to_vmem [thread:$0]  %s0, 512, %s18, [#allocation3], 256, 256, 16
    $region5: #{tpu_custom_call.1} parent=1 // pred_fallthru
      _
    // Predicated region
    $region6: #{tpu_custom_call.1} parent=1 // pred_check
      _
    $region7: #{tpu_custom_call.1} parent=1 // pred_check_branch
      %25 = sbr.rel (0) target = $region9
    $region8: #{tpu_custom_call.1} parent=1 // pred_region
      _
    $region9: #{tpu_custom_call.1} parent=1 // pred_fallthru
      _
    // Predicated region
    $region10: #{tpu_custom_call.1} parent=1 // pred_check
      _
    $region11: #{tpu_custom_call.1} parent=1 // pred_check_branch
      %27 = sbr.rel (0) target = $region13
    $region12: #{tpu_custom_call.1} parent=1 // pred_region
      _
    $region13: #{tpu_custom_call.1} parent=1 // pred_fallthru
      _
    // Predicated region
    $region14: #{tpu_custom_call.1} parent=1 // pred_check
      _
    $region15: #{tpu_custom_call.1} parent=1 // pred_check_branch
      %29 = sbr.rel (0) target = $region17
    $region16: #{tpu_custom_call.1} parent=1 // pred_region
      _
    $region17: #{tpu_custom_call.1} parent=1 // pred_fallthru
      _
    // Predicated region
    $region18: #{tpu_custom_call.1} parent=1 // pred_check
      _
    $region19: #{tpu_custom_call.1} parent=1 // pred_check_branch
      %31 = sbr.rel (0) target = $region21
    $region20: #{tpu_custom_call.1} parent=1 // pred_region
      _
    $region21: #{tpu_custom_call.1} parent=1 // pred_fallthru
      _
    // Predicated region
    $region22: #{tpu_custom_call.1} parent=1 // pred_check
      _
    $region23: #{tpu_custom_call.1} parent=1 // pred_check_branch
      %33 = sbr.rel (0) target = $region25
    $region24: #{tpu_custom_call.1} parent=1 // pred_region
      %34 = dma.done [#allocation3], 512
    $region25: #{tpu_custom_call.1} parent=1 // pred_fallthru
      _
    %v35 = vld [vmem:[%s1] sm:$0xff]
    %v36 = vld [vmem:[%s3] sm:$0xff]
    %v37 = vld [vmem:[%s2] sm:$0xff]
    %v38 = vld [vmem:[%s4] sm:$0xff]
    %v39 = vld [vmem:[#allocation2] sm:$0xff]
    %v40 = vld [vmem:[#allocation2 + $0x8] sm:$0xff]
    %42 = vset.pattern.permute.xlu0 0
    %43 = vperm.xlu0 %42, %v37
    %v44 = vpop.permute.xlu0 %43
    %vm46 = vcmask 64512
    %v48 = vsel %vm46, %v35, 0
    %50 = vmatprep.subr.mxu0 %v40
    %51 = vmatpush1.msra.mxu0 %v39
    %52 = vmatprep.subr.mxu0 0.0
    %53 = vmatpush1.msra.mxu0 0.0
    %54 = vmatprep.subr.mxu0 0.0
    %55 = vmatpush1.msra.mxu0 0.0
    %56 = vmatprep.subr.mxu0 0.0
    %57 = vmatpush1.msra.mxu0 0.0
    %58 = vmatprep.subr.mxu0 0.0
    %59 = vmatpush1.msra.mxu0 0.0
    %60 = vmatprep.subr.mxu0 0.0
    %61 = vmatpush1.msra.mxu0 0.0
    %62 = vmatprep.subr.mxu0 0.0
    %63 = vmatpush1.msra.mxu0 0.0
    %64 = vmatprep.subr.mxu0 0.0
    %65 = vmatpush1.msra.mxu0 0.0
    %66 = vmatprep.subr.mxu0 0.0
    %67 = vmatpush1.msra.mxu0 0.0
    %68 = vmatprep.subr.mxu0 0.0
    %69 = vmatpush1.msra.mxu0 0.0
    %70 = vmatprep.subr.mxu0 0.0
    %71 = vmatpush1.msra.mxu0 0.0
    %72 = vmatprep.subr.mxu0 0.0
    %73 = vmatpush1.msra.mxu0 0.0
    %74 = vmatprep.subr.mxu0 0.0
    %75 = vmatpush1.msra.mxu0 0.0
    %76 = vmatprep.subr.mxu0 0.0
    %77 = vmatpush1.msra.mxu0 0.0
    %78 = vmatprep.subr.mxu0 0.0
    %79 = vmatpush1.msra.mxu0 0.0
    %80 = vmatprep.subr.mxu0 0.0
    %81 = vmatpush1.msra.mxu0 0.0
    %82 = vmatprep.subr.mxu0 0.0
    %83 = vmatpush1.msra.mxu0 0.0
    %84 = vmatprep.subr.mxu0 0.0
    %85 = vmatpush1.msra.mxu0 0.0
    %86 = vmatprep.subr.mxu0 0.0
    %87 = vmatpush1.msra.mxu0 0.0
    %88 = vmatprep.subr.mxu0 0.0
    %89 = vmatpush1.msra.mxu0 0.0
    %90 = vmatprep.subr.mxu0 0.0
    %91 = vmatpush1.msra.mxu0 0.0
    %92 = vmatprep.subr.mxu0 0.0
    %93 = vmatpush1.msra.mxu0 0.0
    %94 = vmatprep.subr.mxu0 0.0
    %95 = vmatpush1.msra.mxu0 0.0
    %96 = vmatprep.subr.mxu0 0.0
    %97 = vmatpush1.msra.mxu0 0.0
    %98 = vmatprep.subr.mxu0 0.0
    %99 = vmatpush1.msra.mxu0 0.0
    %100 = vmatprep.subr.mxu0 0.0
    %101 = vmatpush1.msra.mxu0 0.0
    %102 = vmatprep.subr.mxu0 0.0
    %103 = vmatpush1.msra.mxu0 0.0
    %104 = vmatprep.subr.mxu0 0.0
    %105 = vmatpush1.msra.mxu0 0.0
    %106 = vmatprep.subr.mxu0 0.0
    %107 = vmatpush1.msra.mxu0 0.0
    %108 = vmatprep.subr.mxu0 0.0
    %109 = vmatpush1.msra.mxu0 0.0
    %110 = vmatprep.subr.mxu0 0.0
    %111 = vmatpush1.msra.mxu0 0.0
    %112 = vmatprep.subr.mxu0 0.0
    %113 = vmatpush1.msra.mxu0 0.0
    %114 = vmatprep.mubr.f32.mxu0 0.0
    %115 = vmatmul.mubr.f32.gmra.mrb[0].mxu0 %v48
    %v116 = vpop.f32.mrb[0].mxu0
    %v117 = vadd.f32 %v44, %v116
    %v118 = vpop.f32.mrb[0].mxu0
    %v119 = vadd.f32 %v44, %v118
    %120 = vdwg.mxu0
    %v121 = vmax.f32 %v117, 0.0
    %v122 = vmax.f32 %v119, 0.0
    %124 = vset.pattern.permute.xlu0 0
    %125 = vperm.xlu0 %124, %v38
    %v126 = vpop.permute.xlu0 %125
    %v129 = vsel %vm46, %v36, 0
    %131 = vmatprep.subr.mxu0 %v122
    %132 = vmatpush1.msra.mxu0 %v121
    %133 = vmatprep.subr.mxu0 0.0
    %134 = vmatpush1.msra.mxu0 0.0
    %135 = vmatprep.subr.mxu0 0.0
    %136 = vmatpush1.msra.mxu0 0.0
    %137 = vmatprep.subr.mxu0 0.0
    %138 = vmatpush1.msra.mxu0 0.0
    %139 = vmatprep.subr.mxu0 0.0
    %140 = vmatpush1.msra.mxu0 0.0
    %141 = vmatprep.subr.mxu0 0.0
    %142 = vmatpush1.msra.mxu0 0.0
    %143 = vmatprep.subr.mxu0 0.0
    %144 = vmatpush1.msra.mxu0 0.0
    %145 = vmatprep.subr.mxu0 0.0
    %146 = vmatpush1.msra.mxu0 0.0
    %147 = vmatprep.subr.mxu0 0.0
    %148 = vmatpush1.msra.mxu0 0.0
    %149 = vmatprep.subr.mxu0 0.0
    %150 = vmatpush1.msra.mxu0 0.0
    %151 = vmatprep.subr.mxu0 0.0
    %152 = vmatpush1.msra.mxu0 0.0
    %153 = vmatprep.subr.mxu0 0.0
    %154 = vmatpush1.msra.mxu0 0.0
    %155 = vmatprep.subr.mxu0 0.0
    %156 = vmatpush1.msra.mxu0 0.0
    %157 = vmatprep.subr.mxu0 0.0
    %158 = vmatpush1.msra.mxu0 0.0
    %159 = vmatprep.subr.mxu0 0.0
    %160 = vmatpush1.msra.mxu0 0.0
    %161 = vmatprep.subr.mxu0 0.0
    %162 = vmatpush1.msra.mxu0 0.0
    %163 = vmatprep.subr.mxu0 0.0
    %164 = vmatpush1.msra.mxu0 0.0
    %165 = vmatprep.subr.mxu0 0.0
    %166 = vmatpush1.msra.mxu0 0.0
    %167 = vmatprep.subr.mxu0 0.0
    %168 = vmatpush1.msra.mxu0 0.0
    %169 = vmatprep.subr.mxu0 0.0
    %170 = vmatpush1.msra.mxu0 0.0
    %171 = vmatprep.subr.mxu0 0.0
    %172 = vmatpush1.msra.mxu0 0.0
    %173 = vmatprep.subr.mxu0 0.0
    %174 = vmatpush1.msra.mxu0 0.0
    %175 = vmatprep.subr.mxu0 0.0
    %176 = vmatpush1.msra.mxu0 0.0
    %177 = vmatprep.subr.mxu0 0.0
    %178 = vmatpush1.msra.mxu0 0.0
    %179 = vmatprep.subr.mxu0 0.0
    %180 = vmatpush1.msra.mxu0 0.0
    %181 = vmatprep.subr.mxu0 0.0
    %182 = vmatpush1.msra.mxu0 0.0
    %183 = vmatprep.subr.mxu0 0.0
    %184 = vmatpush1.msra.mxu0 0.0
    %185 = vmatprep.subr.mxu0 0.0
    %186 = vmatpush1.msra.mxu0 0.0
    %187 = vmatprep.subr.mxu0 0.0
    %188 = vmatpush1.msra.mxu0 0.0
    %189 = vmatprep.subr.mxu0 0.0
    %190 = vmatpush1.msra.mxu0 0.0
    %191 = vmatprep.subr.mxu0 0.0
    %192 = vmatpush1.msra.mxu0 0.0
    %193 = vmatprep.subr.mxu0 0.0
    %194 = vmatpush1.msra.mxu0 0.0
    %195 = vmatprep.mubr.f32.mxu0 0.0
    %196 = vmatmul.mubr.f32.gmra.mrb[0].mxu0 %v129
    %v197 = vpop.f32.mrb[0].mxu0
    %v198 = vadd.f32 %v126, %v197
    %v199 = vpop.f32.mrb[0].mxu0
    %v200 = vadd.f32 %v126, %v199
    %201 = vdwg.mxu0
    %v202 = vadd.f32 %v39, %v198
    %v203 = vadd.f32 %v40, %v200
    %v204 = vmax.f32 %v202, 0.0
    %v205 = vmax.f32 %v203, 0.0
    %206 = vst [vmem:[#allocation5] sm:$0xff] %v204
    %207 = vst [vmem:[#allocation5 + $0x8] sm:$0xff] %v205
    %s208 = scalar_lea.vmem [#allocation2], 16
    %v209 = vld [vmem:[%s208] sm:$0xff]
    %v210 = vld [vmem:[%s208 + $0x8] sm:$0xff]
    %211 = vmatprep.subr.mxu0 %v210
    %212 = vmatpush1.msra.mxu0 %v209
    %213 = vmatprep.subr.mxu0 0.0
    %214 = vmatpush1.msra.mxu0 0.0
    %215 = vmatprep.subr.mxu0 0.0
    %216 = vmatpush1.msra.mxu0 0.0
    %217 = vmatprep.subr.mxu0 0.0
    %218 = vmatpush1.msra.mxu0 0.0
    %219 = vmatprep.subr.mxu0 0.0
    %220 = vmatpush1.msra.mxu0 0.0
    %221 = vmatprep.subr.mxu0 0.0
    %222 = vmatpush1.msra.mxu0 0.0
    %223 = vmatprep.subr.mxu0 0.0
    %224 = vmatpush1.msra.mxu0 0.0
    %225 = vmatprep.subr.mxu0 0.0
    %226 = vmatpush1.msra.mxu0 0.0
    %227 = vmatprep.subr.mxu0 0.0
    %228 = vmatpush1.msra.mxu0 0.0
    %229 = vmatprep.subr.mxu0 0.0
    %230 = vmatpush1.msra.mxu0 0.0
    %231 = vmatprep.subr.mxu0 0.0
    %232 = vmatpush1.msra.mxu0 0.0
    %233 = vmatprep.subr.mxu0 0.0
    %234 = vmatpush1.msra.mxu0 0.0
    %235 = vmatprep.subr.mxu0 0.0
    %236 = vmatpush1.msra.mxu0 0.0
    %237 = vmatprep.subr.mxu0 0.0
    %238 = vmatpush1.msra.mxu0 0.0
    %239 = vmatprep.subr.mxu0 0.0
    %240 = vmatpush1.msra.mxu0 0.0
    %241 = vmatprep.subr.mxu0 0.0
    %242 = vmatpush1.msra.mxu0 0.0
    %243 = vmatprep.subr.mxu0 0.0
    %244 = vmatpush1.msra.mxu0 0.0
    %245 = vmatprep.subr.mxu0 0.0
    %246 = vmatpush1.msra.mxu0 0.0
    %247 = vmatprep.subr.mxu0 0.0
    %248 = vmatpush1.msra.mxu0 0.0
    %249 = vmatprep.subr.mxu0 0.0
    %250 = vmatpush1.msra.mxu0 0.0
    %251 = vmatprep.subr.mxu0 0.0
    %252 = vmatpush1.msra.mxu0 0.0
    %253 = vmatprep.subr.mxu0 0.0
    %254 = vmatpush1.msra.mxu0 0.0
    %255 = vmatprep.subr.mxu0 0.0
    %256 = vmatpush1.msra.mxu0 0.0
    %257 = vmatprep.subr.mxu0 0.0
    %258 = vmatpush1.msra.mxu0 0.0
    %259 = vmatprep.subr.mxu0 0.0
    %260 = vmatpush1.msra.mxu0 0.0
    %261 = vmatprep.subr.mxu0 0.0
    %262 = vmatpush1.msra.mxu0 0.0
    %263 = vmatprep.subr.mxu0 0.0
    %264 = vmatpush1.msra.mxu0 0.0
    %265 = vmatprep.subr.mxu0 0.0
    %266 = vmatpush1.msra.mxu0 0.0
    %267 = vmatprep.subr.mxu0 0.0
    %268 = vmatpush1.msra.mxu0 0.0
    %269 = vmatprep.subr.mxu0 0.0
    %270 = vmatpush1.msra.mxu0 0.0
    %271 = vmatprep.subr.mxu0 0.0
    %272 = vmatpush1.msra.mxu0 0.0
    %273 = vmatprep.subr.mxu0 0.0
    %274 = vmatpush1.msra.mxu0 0.0
    %275 = vmatprep.mubr.f32.mxu0 0.0
    %276 = vmatmul.mubr.f32.gmra.mrb[0].mxu0 %v48
    %v277 = vpop.f32.mrb[0].mxu0
    %v278 = vadd.f32 %v44, %v277
    %v279 = vpop.f32.mrb[0].mxu0
    %v280 = vadd.f32 %v44, %v279
    %281 = vdwg.mxu0
    %v282 = vmax.f32 %v278, 0.0
    %v283 = vmax.f32 %v280, 0.0
    %284 = vmatprep.subr.mxu0 %v283
    %285 = vmatpush1.msra.mxu0 %v282
    %286 = vmatprep.subr.mxu0 0.0
    %287 = vmatpush1.msra.mxu0 0.0
    %288 = vmatprep.subr.mxu0 0.0
    %289 = vmatpush1.msra.mxu0 0.0
    %290 = vmatprep.subr.mxu0 0.0
    %291 = vmatpush1.msra.mxu0 0.0
    %292 = vmatprep.subr.mxu0 0.0
    %293 = vmatpush1.msra.mxu0 0.0
    %294 = vmatprep.subr.mxu0 0.0
    %295 = vmatpush1.msra.mxu0 0.0
    %296 = vmatprep.subr.mxu0 0.0
    %297 = vmatpush1.msra.mxu0 0.0
    %298 = vmatprep.subr.mxu0 0.0
    %299 = vmatpush1.msra.mxu0 0.0
    %300 = vmatprep.subr.mxu0 0.0
    %301 = vmatpush1.msra.mxu0 0.0
    %302 = vmatprep.subr.mxu0 0.0
    %303 = vmatpush1.msra.mxu0 0.0
    %304 = vmatprep.subr.mxu0 0.0
    %305 = vmatpush1.msra.mxu0 0.0
    %306 = vmatprep.subr.mxu0 0.0
    %307 = vmatpush1.msra.mxu0 0.0
    %308 = vmatprep.subr.mxu0 0.0
    %309 = vmatpush1.msra.mxu0 0.0
    %310 = vmatprep.subr.mxu0 0.0
    %311 = vmatpush1.msra.mxu0 0.0
    %312 = vmatprep.subr.mxu0 0.0
    %313 = vmatpush1.msra.mxu0 0.0
    %314 = vmatprep.subr.mxu0 0.0
    %315 = vmatpush1.msra.mxu0 0.0
    %316 = vmatprep.subr.mxu0 0.0
    %317 = vmatpush1.msra.mxu0 0.0
    %318 = vmatprep.subr.mxu0 0.0
    %319 = vmatpush1.msra.mxu0 0.0
    %320 = vmatprep.subr.mxu0 0.0
    %321 = vmatpush1.msra.mxu0 0.0
    %322 = vmatprep.subr.mxu0 0.0
    %323 = vmatpush1.msra.mxu0 0.0
    %324 = vmatprep.subr.mxu0 0.0
    %325 = vmatpush1.msra.mxu0 0.0
    %326 = vmatprep.subr.mxu0 0.0
    %327 = vmatpush1.msra.mxu0 0.0
    %328 = vmatprep.subr.mxu0 0.0
    %329 = vmatpush1.msra.mxu0 0.0
    %330 = vmatprep.subr.mxu0 0.0
    %331 = vmatpush1.msra.mxu0 0.0
    %332 = vmatprep.subr.mxu0 0.0
    %333 = vmatpush1.msra.mxu0 0.0
    %334 = vmatprep.subr.mxu0 0.0
    %335 = vmatpush1.msra.mxu0 0.0
    %336 = vmatprep.subr.mxu0 0.0
    %337 = vmatpush1.msra.mxu0 0.0
    %338 = vmatprep.subr.mxu0 0.0
    %339 = vmatpush1.msra.mxu0 0.0
    %340 = vmatprep.subr.mxu0 0.0
    %341 = vmatpush1.msra.mxu0 0.0
    %342 = vmatprep.subr.mxu0 0.0
    %343 = vmatpush1.msra.mxu0 0.0
    %344 = vmatprep.subr.mxu0 0.0
    %345 = vmatpush1.msra.mxu0 0.0
    %346 = vmatprep.subr.mxu0 0.0
    %347 = vmatpush1.msra.mxu0 0.0
    %348 = vmatprep.mubr.f32.mxu0 0.0
    %349 = vmatmul.mubr.f32.gmra.mrb[0].mxu0 %v129
    %v350 = vpop.f32.mrb[0].mxu0
    %v351 = vadd.f32 %v126, %v350
    %v352 = vpop.f32.mrb[0].mxu0
    %v353 = vadd.f32 %v126, %v352
    %354 = vdwg.mxu0
    %v355 = vadd.f32 %v209, %v351
    %v356 = vadd.f32 %v210, %v353
    %v357 = vmax.f32 %v355, 0.0
    %v358 = vmax.f32 %v356, 0.0
    %s359 = scalar_lea.vmem [#allocation5], 16
    %360 = vst [vmem:[%s359] sm:$0xff] %v357
    %361 = vst [vmem:[%s359 + $0x8] sm:$0xff] %v358
    // Predicated region
    $region26: #{tpu_custom_call.1} parent=1 // pred_check
      _
    $region27: #{tpu_custom_call.1} parent=1 // pred_check_branch
      %363 = sbr.rel (0) target = $region29
    $region28: #{tpu_custom_call.1} parent=1 // pred_region
      %s365 = ssub.s32 512, 512
      %366 = vsyncadd [#allocation4], %s365
      %s367 = sshll.u32 [#allocation5], 4
      %s368 = int_to_ptr.vmem [resolvable:$true] %s367
      %373 = dma.vmem_to_hbm [thread:$0]  %s368, 512, %s5, [#allocation4], 256, 256, 16
    $region29: #{tpu_custom_call.1} parent=1 // pred_fallthru
      _
    // Predicated region
    $region30: #{tpu_custom_call.1} parent=1 // pred_check
      _
    $region31: #{tpu_custom_call.1} parent=1 // pred_check_branch
      %375 = sbr.rel (0) target = $region33
    $region32: #{tpu_custom_call.1} parent=1 // pred_region
      %376 = dma.done [#allocation4], 512
    $region33: #{tpu_custom_call.1} parent=1 // pred_fallthru
      _
    %377 = vsyncpa [#allocation3], 1
    %378 = vsyncpa [#allocation4], 1

</llo_original>
